<compile_context>
chip_gen: v7x
topology: tpu7x:2x2x1
jax: 0.10.0
libtpu: 0.0.40
codegen_flags: <defaults>
</compile_context>

<pallas_src>
import functools

import numpy as np
import jax
import jax.numpy as jnp
from jax import lax
from jax.experimental import pallas as pl
from jax.experimental.pallas import tpu as pltpu


# ----------------------------- Pallas kernel -------------------------------

def sca_kernel(x_ref, pool_ref, wqT_ref, wkT_ref, gamma_ref, beta_ref, o_ref,
               *, eps, inv_sqrt_d, inv_n):
    """Per-batch-element SCA_v4 forward.

    x_ref:     (1, C, HW)   raw input tile (flattened spatial on lanes)
    pool_ref:  (HW, win)    constant adaptive-avg-pool matrix
    wqT_ref:   (win, win)   Wq^T  (q = y_pooled @ Wq^T)
    wkT_ref:   (win, win)   Wk^T
    gamma_ref: (C, 1)       GroupNorm affine weight
    beta_ref:  (C, 1)       GroupNorm affine bias
    o_ref:     (1, C, HW)   output tile
    """
    x = x_ref[0]                                       # (C, HW)

    # GroupNorm(1, C) statistics over all channels+spatial, one fused sweep.
    s = jnp.sum(x)
    ss = jnp.sum(x * x)
    mean = s * inv_n
    var = ss * inv_n - mean * mean                     # biased variance
    rstd = lax.rsqrt(var + eps)

    # Adaptive average pooling as a matmul on the RAW x (affine commutes with
    # pooling), then apply the folded GroupNorm affine on the tiny pooled map.
    xp = jnp.dot(x, pool_ref[...], preferred_element_type=jnp.float32)   # (C, win)
    y = (xp - mean) * (gamma_ref[...] * rstd) + beta_ref[...]            # (C, win)

    # SelfAttention2 over channels: q/k projections + scaled softmax.
    q = jnp.dot(y, wqT_ref[...], preferred_element_type=jnp.float32)     # (C, win)
    k = jnp.dot(y, wkT_ref[...], preferred_element_type=jnp.float32)     # (C, win)
    logits = lax.dot_general(q, k, (((1,), (1,)), ((), ())),
                             preferred_element_type=jnp.float32)         # (C, C)
    logits = logits * inv_sqrt_d
    m = jnp.max(logits, axis=-1, keepdims=True)
    e = jnp.exp(logits - m)
    dist = e / jnp.sum(e, axis=-1, keepdims=True)                        # (C, C)

    # Mix channels of the RAW (un-normalized) input with the attention map.
    o_ref[0] = jnp.dot(dist, x, preferred_element_type=jnp.float32)      # (C, HW)


# ------------------------------ JAX wrapper --------------------------------

def build_pool_matrix(H, W, G):
    """(HW, G*G) matrix P with P[hw, g] = 1/area(bin g) if pixel hw is in bin g.

    Uses the exact PyTorch AdaptiveAvgPool2d bin rule:
      start = floor(i*H/G), end = ceil((i+1)*H/G).
    """
    P = np.zeros((H * W, G * G), np.float32)
    for i in range(G):
        hs = (i * H) // G
        he = -(-((i + 1) * H) // G)
        for j in range(G):
            ws = (j * W) // G
            we = -(-((j + 1) * W) // G)
            inv_area = 1.0 / float((he - hs) * (we - ws))
            for hh in range(hs, he):
                for ww in range(ws, we):
                    P[hh * W + ww, i * G + j] = inv_area
    return jnp.asarray(P)


def sca_v4_forward(x_nchw, params, *, gap_size, eps=1e-5):
    B, C, H, W = x_nchw.shape
    win = gap_size * gap_size
    HW = H * W
    # NOTE: HW being a multiple of 128 keeps the output stores lane-dense
    # (perf only, not correctness).

    pool = build_pool_matrix(H, W, gap_size)                       # (HW, win)
    wqT = params["wq"].T.astype(jnp.float32)                       # (win, win)
    wkT = params["wk"].T.astype(jnp.float32)
    gamma = params["norm_w"].reshape(C, 1).astype(jnp.float32)
    beta = params["norm_b"].reshape(C, 1).astype(jnp.float32)
    x = x_nchw.reshape(B, C, HW).astype(jnp.float32)

    kernel = functools.partial(
        sca_kernel,
        eps=eps,
        inv_sqrt_d=float(1.0 / np.sqrt(win)),
        inv_n=float(1.0 / (C * HW)),
    )

    # Rough per-step VMEM residency (bytes): x + out double-buffered, plus the
    # broadcast operands and small intermediates.  Only raise the scoped limit
    # when the default (16/32 MiB) is not enough; cap well under v7x's 64 MiB.
    need = 4 * (2 * 2 * C * HW                        # x + out, double-buffered
                + HW * win + 2 * win * win + 2 * C    # broadcast operands
                + 4 * C * win + 4 * C * C)            # intermediates + slack
    vmem_limit = None
    if need > (24 << 20):
        vmem_limit = int(min(2 * need, 48 << 20))

    out = pl.pallas_call(
        kernel,
        out_shape=jax.ShapeDtypeStruct((B, C, HW), jnp.float32),
        grid=(B,),
        in_specs=[
            pl.BlockSpec((1, C, HW), lambda b: (b, 0, 0)),     # x
            pl.BlockSpec((HW, win), lambda b: (0, 0)),         # pooling matrix
            pl.BlockSpec((win, win), lambda b: (0, 0)),        # Wq^T
            pl.BlockSpec((win, win), lambda b: (0, 0)),        # Wk^T
            pl.BlockSpec((C, 1), lambda b: (0, 0)),            # norm gamma
            pl.BlockSpec((C, 1), lambda b: (0, 0)),            # norm beta
        ],
        out_specs=pl.BlockSpec((1, C, HW), lambda b: (b, 0, 0)),
        compiler_params=pltpu.CompilerParams(
            dimension_semantics=("parallel",),
            vmem_limit_bytes=vmem_limit),
    )(x, pool, wqT, wkT, gamma, beta)

    return out.reshape(B, C, H, W)


# ----------------------- pure-JAX reference (NCHW) --------------------------

def sca_v4_reference(x, params, *, gap_size, eps=1e-5):
    B, C, H, W = x.shape
    G = gap_size
    win = G * G

    # GroupNorm(1, C): per-sample stats over (C, H, W), per-channel affine.
    mean = x.mean(axis=(1, 2, 3), keepdims=True)
    var = ((x - mean) ** 2).mean(axis=(1, 2, 3), keepdims=True)
    y = (x - mean) / jnp.sqrt(var + eps)
    y = y * params["norm_w"].reshape(1, -1, 1, 1) + params["norm_b"].reshape(1, -1, 1, 1)

    # AdaptiveAvgPool2d with the PyTorch bin rule.
    rows = []
    for i in range(G):
        hs, he = (i * H) // G, -(-((i + 1) * H) // G)
        cols = []
        for j in range(G):
            ws, we = (j * W) // G, -(-((j + 1) * W) // G)
            cols.append(y[:, :, hs:he, ws:we].mean(axis=(2, 3)))
        rows.append(jnp.stack(cols, axis=-1))
    yp = jnp.stack(rows, axis=-2).reshape(B, C, win)

    # SelfAttention2: q/k linear (no bias), scaled softmax over channels.
    q = jnp.einsum('bcn,kn->bck', yp, params["wq"])
    k = jnp.einsum('bcn,kn->bck', yp, params["wk"])
    logits = jnp.einsum('bck,bdk->bcd', q, k) / np.sqrt(win)
    dist = jax.nn.softmax(logits, axis=-1)

    out = jnp.einsum('bcd,bdn->bcn', dist, x.reshape(B, C, H * W))
    return out.reshape(B, C, H, W)


# ---------------------------------- main ------------------------------------

if __name__ == "__main__":
    B, C, H, W = 2, 8, 16, 16
    gap_size = 8
    win = gap_size * gap_size

    key = jax.random.PRNGKey(0)
    kx, kq, kk, kg, kb = jax.random.split(key, 5)

    x = jax.random.normal(kx, (B, C, H, W), jnp.float32)

    # Synthetic parameters with the shapes SCA_v4.__init__ implies.
    params = {
        "wq": 0.1 * jax.random.normal(kq, (win, win), jnp.float32),  # linear_q.weight
        "wk": 0.1 * jax.random.normal(kk, (win, win), jnp.float32),  # linear_k.weight
        "norm_w": 1.0 + 0.1 * jax.random.normal(kg, (C,), jnp.float32),
        "norm_b": 0.1 * jax.random.normal(kb, (C,), jnp.float32),
    }

    out = jax.block_until_ready(sca_v4_forward(x, params, gap_size=gap_size))
    ref = jax.block_until_ready(sca_v4_reference(x, params, gap_size=gap_size))

    assert out.shape == (B, C, H, W)
    max_err = float(jnp.max(jnp.abs(out - ref)))
    assert jnp.allclose(out, ref, atol=1e-4, rtol=1e-4), f"max abs err = {max_err}"

    print("KERNEL_OK")
</pallas_src>

<mosaic_0001>
module attributes {stable_mosaic.version = 11 : i64} {
  func.func @sca_kernel(%arg0: i32, %arg1: memref<1x8x256xf32, #tpu.memory_space<vmem>>, %arg2: memref<256x64xf32, #tpu.memory_space<vmem>>, %arg3: memref<64x64xf32, #tpu.memory_space<vmem>>, %arg4: memref<64x64xf32, #tpu.memory_space<vmem>>, %arg5: memref<8x1xf32, #tpu.memory_space<vmem>>, %arg6: memref<8x1xf32, #tpu.memory_space<vmem>>, %arg7: memref<1x8x256xf32, #tpu.memory_space<vmem>>) attributes {dimension_semantics = [#tpu.dimension_semantics<parallel>], iteration_bounds = array<i64: 2>, scalar_prefetch = 0 : i64, scratch_operands = 0 : i64, tpu.core_type = #tpu.core_type<tc>, window_params = [{transform_indices = @transform_0, window_bounds = array<i64: 1, 8, 256>}, {pipeline_mode = #tpu.pipeline_mode<synchronous>, transform_indices = @transform_1, window_bounds = array<i64: 256, 64>}, {pipeline_mode = #tpu.pipeline_mode<synchronous>, transform_indices = @transform_2, window_bounds = array<i64: 64, 64>}, {pipeline_mode = #tpu.pipeline_mode<synchronous>, transform_indices = @transform_3, window_bounds = array<i64: 64, 64>}, {pipeline_mode = #tpu.pipeline_mode<synchronous>, transform_indices = @transform_4, window_bounds = array<i64: 8, 1>}, {pipeline_mode = #tpu.pipeline_mode<synchronous>, transform_indices = @transform_5, window_bounds = array<i64: 8, 1>}, {transform_indices = @transform_6, window_bounds = array<i64: 1, 8, 256>}]} {
    %c0 = arith.constant 0 : index
    %c0_0 = arith.constant 0 : index
    %c0_1 = arith.constant 0 : index
    %0 = vector.load %arg1[%c0, %c0_0, %c0_1] : memref<1x8x256xf32, #tpu.memory_space<vmem>>, vector<1x8x256xf32>
    %1 = vector.shape_cast %0 : vector<1x8x256xf32> to vector<8x256xf32>
    %2 = vector.shape_cast %1 : vector<8x256xf32> to vector<1x8x256xf32>
    %cst = arith.constant dense<0.000000e+00> : vector<1xf32>
    %3 = vector.multi_reduction <add>, %2, %cst [1, 2] : vector<1x8x256xf32> to vector<1xf32>
    %4 = vector.shape_cast %3 : vector<1xf32> to vector<1x1x1xf32>
    %5 = vector.extract %4[0, 0, 0] : f32 from vector<1x1x1xf32>
    %6 = arith.mulf %1, %1 : vector<8x256xf32>
    %7 = vector.shape_cast %6 : vector<8x256xf32> to vector<1x8x256xf32>
    %cst_2 = arith.constant dense<0.000000e+00> : vector<1xf32>
    %8 = vector.multi_reduction <add>, %7, %cst_2 [1, 2] : vector<1x8x256xf32> to vector<1xf32>
    %9 = vector.shape_cast %8 : vector<1xf32> to vector<1x1x1xf32>
    %10 = vector.extract %9[0, 0, 0] : f32 from vector<1x1x1xf32>
    %cst_3 = arith.constant 4.8828125E-4 : f32
    %11 = arith.mulf %5, %cst_3 : f32
    %cst_4 = arith.constant 4.8828125E-4 : f32
    %12 = arith.mulf %10, %cst_4 : f32
    %13 = arith.mulf %11, %11 : f32
    %14 = arith.subf %12, %13 : f32
    %cst_5 = arith.constant 9.99999974E-6 : f32
    %15 = arith.addf %14, %cst_5 : f32
    %16 = math.rsqrt %15 : f32
    %c0_6 = arith.constant 0 : index
    %c0_7 = arith.constant 0 : index
    %17 = vector.load %arg2[%c0_6, %c0_7] : memref<256x64xf32, #tpu.memory_space<vmem>>, vector<256x64xf32>
    %cst_8 = arith.constant dense<0.000000e+00> : vector<8x64xf32>
    %18 = tpu.matmul %1, %17, %cst_8 {dimension_numbers = #tpu.dot_dimension_numbers<[1], [0], [0], [1], [0, 0, 1, 1], [], []>} : vector<8x256xf32>, vector<256x64xf32>, vector<8x64xf32> -> vector<8x64xf32>
    %19 = vector.broadcast %11 : f32 to vector<8x64xf32>
    %20 = arith.subf %18, %19 : vector<8x64xf32>
    %c0_9 = arith.constant 0 : index
    %c0_10 = arith.constant 0 : index
    %21 = vector.load %arg5[%c0_9, %c0_10] : memref<8x1xf32, #tpu.memory_space<vmem>>, vector<8x1xf32>
    %22 = vector.broadcast %16 : f32 to vector<8x1xf32>
    %23 = arith.mulf %21, %22 : vector<8x1xf32>
    %24 = vector.broadcast %23 : vector<8x1xf32> to vector<8x64xf32>
    %25 = arith.mulf %20, %24 : vector<8x64xf32>
    %c0_11 = arith.constant 0 : index
    %c0_12 = arith.constant 0 : index
    %26 = vector.load %arg6[%c0_11, %c0_12] : memref<8x1xf32, #tpu.memory_space<vmem>>, vector<8x1xf32>
    %27 = vector.broadcast %26 : vector<8x1xf32> to vector<8x64xf32>
    %28 = arith.addf %25, %27 : vector<8x64xf32>
    %c0_13 = arith.constant 0 : index
    %c0_14 = arith.constant 0 : index
    %29 = vector.load %arg3[%c0_13, %c0_14] : memref<64x64xf32, #tpu.memory_space<vmem>>, vector<64x64xf32>
    %cst_15 = arith.constant dense<0.000000e+00> : vector<8x64xf32>
    %30 = tpu.matmul %28, %29, %cst_15 {dimension_numbers = #tpu.dot_dimension_numbers<[1], [0], [0], [1], [0, 0, 1, 1], [], []>} : vector<8x64xf32>, vector<64x64xf32>, vector<8x64xf32> -> vector<8x64xf32>
    %c0_16 = arith.constant 0 : index
    %c0_17 = arith.constant 0 : index
    %31 = vector.load %arg4[%c0_16, %c0_17] : memref<64x64xf32, #tpu.memory_space<vmem>>, vector<64x64xf32>
    %cst_18 = arith.constant dense<0.000000e+00> : vector<8x64xf32>
    %32 = tpu.matmul %28, %31, %cst_18 {dimension_numbers = #tpu.dot_dimension_numbers<[1], [0], [0], [1], [0, 0, 1, 1], [], []>} : vector<8x64xf32>, vector<64x64xf32>, vector<8x64xf32> -> vector<8x64xf32>
    %cst_19 = arith.constant dense<0.000000e+00> : vector<8x8xf32>
    %33 = tpu.matmul %30, %32, %cst_19 {dimension_numbers = #tpu.dot_dimension_numbers<[1], [1], [0], [0], [0, 0, 1, 0], [], []>} : vector<8x64xf32>, vector<8x64xf32>, vector<8x8xf32> -> vector<8x8xf32>
    %cst_20 = arith.constant 1.250000e-01 : f32
    %34 = vector.broadcast %cst_20 : f32 to vector<8x8xf32>
    %35 = arith.mulf %33, %34 : vector<8x8xf32>
    %cst_21 = arith.constant dense<0xFF800000> : vector<8xf32>
    %36 = vector.multi_reduction <maximumf>, %35, %cst_21 [1] : vector<8x8xf32> to vector<8xf32>
    %37 = vector.shape_cast %36 : vector<8xf32> to vector<8x1xf32>
    %38 = vector.broadcast %37 : vector<8x1xf32> to vector<8x8xf32>
    %39 = arith.subf %35, %38 : vector<8x8xf32>
    %40 = math.exp %39 : vector<8x8xf32>
    %cst_22 = arith.constant dense<0.000000e+00> : vector<8xf32>
    %41 = vector.multi_reduction <add>, %40, %cst_22 [1] : vector<8x8xf32> to vector<8xf32>
    %42 = vector.shape_cast %41 : vector<8xf32> to vector<8x1xf32>
    %43 = vector.broadcast %42 : vector<8x1xf32> to vector<8x8xf32>
    %44 = arith.divf %40, %43 : vector<8x8xf32>
    %cst_23 = arith.constant dense<0.000000e+00> : vector<8x256xf32>
    %45 = tpu.matmul %44, %1, %cst_23 {dimension_numbers = #tpu.dot_dimension_numbers<[1], [0], [0], [1], [0, 0, 1, 1], [], []>} : vector<8x8xf32>, vector<8x256xf32>, vector<8x256xf32> -> vector<8x256xf32>
    %c0_24 = arith.constant 0 : index
    %c0_25 = arith.constant 0 : index
    %c0_26 = arith.constant 0 : index
    %46 = vector.load %arg7[%c0_24, %c0_25, %c0_26] : memref<1x8x256xf32, #tpu.memory_space<vmem>>, vector<1x8x256xf32>
    %47 = vector.shape_cast %46 : vector<1x8x256xf32> to vector<8x256xf32>
    %48 = vector.shape_cast %45 : vector<8x256xf32> to vector<1x8x256xf32>
    tpu.vector_store %arg7[%c0_24, %c0_25, %c0_26], %48 {strides = array<i32>} : memref<1x8x256xf32, #tpu.memory_space<vmem>>, vector<1x8x256xf32>,
    return
  }
  func.func @transform_0(%arg0: i32) -> (i32, i32, i32) {
    %c0_i32 = arith.constant 0 : i32
    %c0_i32_0 = arith.constant 0 : i32
    %c0_i32_1 = arith.constant 0 : i32
    return %arg0, %c0_i32, %c0_i32_0 : i32, i32, i32
  }
  func.func @transform_1(%arg0: i32) -> (i32, i32) {
    %c0_i32 = arith.constant 0 : i32
    %c0_i32_0 = arith.constant 0 : i32
    %c0_i32_1 = arith.constant 0 : i32
    return %c0_i32, %c0_i32_0 : i32, i32
  }
  func.func @transform_2(%arg0: i32) -> (i32, i32) {
    %c0_i32 = arith.constant 0 : i32
    %c0_i32_0 = arith.constant 0 : i32
    %c0_i32_1 = arith.constant 0 : i32
    return %c0_i32, %c0_i32_0 : i32, i32
  }
  func.func @transform_3(%arg0: i32) -> (i32, i32) {
    %c0_i32 = arith.constant 0 : i32
    %c0_i32_0 = arith.constant 0 : i32
    %c0_i32_1 = arith.constant 0 : i32
    return %c0_i32, %c0_i32_0 : i32, i32
  }
  func.func @transform_4(%arg0: i32) -> (i32, i32) {
    %c0_i32 = arith.constant 0 : i32
    %c0_i32_0 = arith.constant 0 : i32
    %c0_i32_1 = arith.constant 0 : i32
    return %c0_i32, %c0_i32_0 : i32, i32
  }
  func.func @transform_5(%arg0: i32) -> (i32, i32) {
    %c0_i32 = arith.constant 0 : i32
    %c0_i32_0 = arith.constant 0 : i32
    %c0_i32_1 = arith.constant 0 : i32
    return %c0_i32, %c0_i32_0 : i32, i32
  }
  func.func @transform_6(%arg0: i32) -> (i32, i32, i32) {
    %c0_i32 = arith.constant 0 : i32
    %c0_i32_0 = arith.constant 0 : i32
    %c0_i32_1 = arith.constant 0 : i32
    return %arg0, %c0_i32, %c0_i32_0 : i32, i32, i32
  }
}

</mosaic_0001>

<llo_original>
// kernel: tpu_custom_call.1
$region0: #{tpu_custom_call.1}
  #allocation0 [shape = 'u32[]', space=smem, size = 0x4, offset = 0x4, fixed_abs, tag = 'smem constant byte address 0x4 - core index']
  #allocation1 [shape = 'u32[144,128]{1,0:T(1,128)}', space=vmem, size = 0x12000, scoped, tag = 'internal scratch']
  %s0 = inlined_call_operand.vmem [shape: f32[2,8,256], index: 0, kind: input, shape index: {}]
  %s1 = inlined_call_operand.vmem [shape: f32[256,64], index: 1, kind: input, shape index: {}]
  %s2 = inlined_call_operand.vmem [shape: f32[64,64], index: 2, kind: input, shape index: {}]
  %s3 = inlined_call_operand.vmem [shape: f32[64,64], index: 3, kind: input, shape index: {}]
  %s4 = inlined_call_operand.vmem [shape: f32[8,1], index: 4, kind: input, shape index: {}]
  %s5 = inlined_call_operand.vmem [shape: f32[8,1], index: 5, kind: input, shape index: {}]
  %s6 = inlined_call_operand.hbm [shape: f32[2,8,256], index: 6, kind: output, shape index: {}]
  %s7 = sld [smem:[#allocation0]]
  $region57: #{tpu_custom_call.1} parent=0
    _
  %s9 = ssub.s32 1, %s7
  %s10 = scalar_select 0, %s9, %s7
  $region1: #{tpu_custom_call.1} parent=0
    #allocation2 [shape = 'u8[16384]{0}', space=vmem, size = 0x4000, scoped, tag = 'output window, operand 0']
    #allocation3 [shape = 's32[2]{0}', space=sflag, size = 0x8, scoped, tag = 'scoped memory for tpu_custom_call.1']
    %11 = vsyncpa [#allocation3], 0
    %s12 = scalar_lea.sflag [#allocation3], 1
    %13 = vsyncpa %s12, 0
    loop: start=0, step=1, limit=4
    $region2: #{tpu_custom_call.1} parent=1 // loop_pre_header
      _
    $region3: #{tpu_custom_call.1} parent=1 // loop_header
      %s15 = sphi 0, %s19
      %p16 = scmp.ge.s32.totalorder %s15, 4
      %s25 = sphi 0, %s27
      %s28 = sphi 0, %s25
      %s29 = sphi 0, %s28
      %s45 = sphi 0, %s29
      %s49 = sphi 0, %s49
      %s51 = sphi 0, %s49
      %s52 = sphi 0, %s51
      %s66 = sphi 0, %s52
      %s70 = sphi 0, %s70
      %s72 = sphi 0, %s70
      %s73 = sphi 0, %s72
      %s87 = sphi 0, %s73
      %s91 = sphi 0, %s91
      %s93 = sphi 0, %s91
      %s94 = sphi 0, %s93
      %s108 = sphi 0, %s94
      %s112 = sphi 0, %s112
      %s114 = sphi 0, %s112
      %s115 = sphi 0, %s114
      %s129 = sphi 0, %s115
      %s133 = sphi 0, %s133
      %s135 = sphi 0, %s133
      %s136 = sphi 0, %s135
      %s150 = sphi 0, %s136
      %s156 = sphi 0, %s158
      %s159 = sphi 0, %s156
      %s160 = sphi 0, %s159
      %s176 = sphi 0, %s160
    $region4: #{tpu_custom_call.1} parent=1 // loop_header_branch
      %18 = sbr.rel (%p16) target = $region8
    $region5: #{tpu_custom_call.1} parent=1 // loop_body
      %s20 = ssub.s32 %s15, 1
      %s21 = ssub.s32 %s15, 2
      %s22 = sadd.s32 %s15, 1
      %s23 = ssub.s32 %s15, %s22
      %p24 = scmp.eq.s32.totalorder %s23, 0
      %s26 = sadd.s32 %s25, 1
      %s27 = scalar_select %p24, %s25, %s26
      %p30 = pneg %p24
      %p31 = scmp.eq.s32.totalorder %s15, 1
      %p32 = por %p30, %p31
      %p33 = scmp.ne.s32.totalorder %s25, %s28
      %p34 = scmp.eq.s32.totalorder %s15, 0
      %p35 = por %p33, %p34
      %p36 = scmp.ne.s32.totalorder %s25, %s28
      %p37 = scmp.eq.s32.totalorder %s20, 1
      %p38 = por %p36, %p37
      %p39 = scmp.ne.s32.totalorder %s28, %s29
      %p40 = scmp.eq.s32.totalorder %s20, 0
      %p41 = por %p39, %p40
      %p42 = scmp.ne.s32.totalorder %s28, %s29
      %p43 = scmp.eq.s32.totalorder %s21, 1
      %p44 = por %p42, %p43
      %p46 = scmp.ne.s32.totalorder %s29, %s45
      %p47 = scmp.eq.s32.totalorder %s21, 0
      %p48 = por %p46, %p47
      %s50 = sadd.s32 %s49, 1
      %p53 = scmp.eq.s32.totalorder %s15, 1
      %p54 = scmp.ne.s32.totalorder %s49, %s51
      %p55 = scmp.eq.s32.totalorder %s15, 0
      %p56 = por %p54, %p55
      %p57 = scmp.ne.s32.totalorder %s49, %s51
      %p58 = scmp.eq.s32.totalorder %s20, 1
      %p59 = por %p57, %p58
      %p60 = scmp.ne.s32.totalorder %s51, %s52
      %p61 = scmp.eq.s32.totalorder %s20, 0
      %p62 = por %p60, %p61
      %p63 = scmp.ne.s32.totalorder %s51, %s52
      %p64 = scmp.eq.s32.totalorder %s21, 1
      %p65 = por %p63, %p64
      %p67 = scmp.ne.s32.totalorder %s52, %s66
      %p68 = scmp.eq.s32.totalorder %s21, 0
      %p69 = por %p67, %p68
      %s71 = sadd.s32 %s70, 1
      %p74 = scmp.eq.s32.totalorder %s15, 1
      %p75 = scmp.ne.s32.totalorder %s70, %s72
      %p76 = scmp.eq.s32.totalorder %s15, 0
      %p77 = por %p75, %p76
      %p78 = scmp.ne.s32.totalorder %s70, %s72
      %p79 = scmp.eq.s32.totalorder %s20, 1
      %p80 = por %p78, %p79
      %p81 = scmp.ne.s32.totalorder %s72, %s73
      %p82 = scmp.eq.s32.totalorder %s20, 0
      %p83 = por %p81, %p82
      %p84 = scmp.ne.s32.totalorder %s72, %s73
      %p85 = scmp.eq.s32.totalorder %s21, 1
      %p86 = por %p84, %p85
      %p88 = scmp.ne.s32.totalorder %s73, %s87
      %p89 = scmp.eq.s32.totalorder %s21, 0
      %p90 = por %p88, %p89
      %s92 = sadd.s32 %s91, 1
      %p95 = scmp.eq.s32.totalorder %s15, 1
      %p96 = scmp.ne.s32.totalorder %s91, %s93
      %p97 = scmp.eq.s32.totalorder %s15, 0
      %p98 = por %p96, %p97
      %p99 = scmp.ne.s32.totalorder %s91, %s93
      %p100 = scmp.eq.s32.totalorder %s20, 1
      %p101 = por %p99, %p100
      %p102 = scmp.ne.s32.totalorder %s93, %s94
      %p103 = scmp.eq.s32.totalorder %s20, 0
      %p104 = por %p102, %p103
      %p105 = scmp.ne.s32.totalorder %s93, %s94
      %p106 = scmp.eq.s32.totalorder %s21, 1
      %p107 = por %p105, %p106
      %p109 = scmp.ne.s32.totalorder %s94, %s108
      %p110 = scmp.eq.s32.totalorder %s21, 0
      %p111 = por %p109, %p110
      %s113 = sadd.s32 %s112, 1
      %p116 = scmp.eq.s32.totalorder %s15, 1
      %p117 = scmp.ne.s32.totalorder %s112, %s114
      %p118 = scmp.eq.s32.totalorder %s15, 0
      %p119 = por %p117, %p118
      %p120 = scmp.ne.s32.totalorder %s112, %s114
      %p121 = scmp.eq.s32.totalorder %s20, 1
      %p122 = por %p120, %p121
      %p123 = scmp.ne.s32.totalorder %s114, %s115
      %p124 = scmp.eq.s32.totalorder %s20, 0
      %p125 = por %p123, %p124
      %p126 = scmp.ne.s32.totalorder %s114, %s115
      %p127 = scmp.eq.s32.totalorder %s21, 1
      %p128 = por %p126, %p127
      %p130 = scmp.ne.s32.totalorder %s115, %s129
      %p131 = scmp.eq.s32.totalorder %s21, 0
      %p132 = por %p130, %p131
      %s134 = sadd.s32 %s133, 1
      %p137 = scmp.eq.s32.totalorder %s15, 1
      %p138 = scmp.ne.s32.totalorder %s133, %s135
      %p139 = scmp.eq.s32.totalorder %s15, 0
      %p140 = por %p138, %p139
      %p141 = scmp.ne.s32.totalorder %s133, %s135
      %p142 = scmp.eq.s32.totalorder %s20, 1
      %p143 = por %p141, %p142
      %p144 = scmp.ne.s32.totalorder %s135, %s136
      %p145 = scmp.eq.s32.totalorder %s20, 0
      %p146 = por %p144, %p145
      %p147 = scmp.ne.s32.totalorder %s135, %s136
      %p148 = scmp.eq.s32.totalorder %s21, 1
      %p149 = por %p147, %p148
      %p151 = scmp.ne.s32.totalorder %s136, %s150
      %p152 = scmp.eq.s32.totalorder %s21, 0
      %p153 = por %p151, %p152
      %s154 = ssub.s32 %s15, %s22
      %p155 = scmp.eq.s32.totalorder %s154, 0
      %s157 = sadd.s32 %s156, 1
      %s158 = scalar_select %p155, %s156, %s157
      %p161 = pneg %p155
      %p162 = scmp.eq.s32.totalorder %s15, 1
      %p163 = por %p161, %p162
      %p164 = scmp.ne.s32.totalorder %s156, %s159
      %p165 = scmp.eq.s32.totalorder %s15, 0
      %p166 = por %p164, %p165
      %p167 = scmp.ne.s32.totalorder %s156, %s159
      %p168 = scmp.eq.s32.totalorder %s20, 1
      %p169 = por %p167, %p168
      %p170 = scmp.ne.s32.totalorder %s159, %s160
      %p171 = scmp.eq.s32.totalorder %s20, 0
      %p172 = por %p170, %p171
      %p173 = scmp.ne.s32.totalorder %s159, %s160
      %p174 = scmp.eq.s32.totalorder %s21, 1
      %p175 = por %p173, %p174
      %p177 = scmp.ne.s32.totalorder %s160, %s176
      %p178 = scmp.eq.s32.totalorder %s21, 0
      %p179 = por %p177, %p178
      %p180 = scmp.le.s32.totalorder 1, %s15
      %p181 = scmp.lt.s32.totalorder %s15, 3
      %p182 = pnand %p180, %p181
      %p183 = pneg %p182
      // Predicated region
      $region9: #{tpu_custom_call.1} parent=5 // pred_check
        _
      $region10: #{tpu_custom_call.1} parent=5 // pred_check_branch
        %185 = sbr.rel (%p182) target = $region12
      $region11: #{tpu_custom_call.1} parent=5 // pred_region
        %s186 = ssub.s32 %s15, 1
        // Predicated region
        $region13: #{tpu_custom_call.1} parent=11 // pred_check
          %p187 = pneg %p62
        $region14: #{tpu_custom_call.1} parent=11 // pred_check_branch
          %189 = sbr.rel (%p187) target = $region16
        $region15: #{tpu_custom_call.1} parent=11 // pred_region
          _
        $region16: #{tpu_custom_call.1} parent=11 // pred_fallthru
          _
        // Predicated region
        $region17: #{tpu_custom_call.1} parent=11 // pred_check
          %p190 = pneg %p83
        $region18: #{tpu_custom_call.1} parent=11 // pred_check_branch
          %192 = sbr.rel (%p190) target = $region20
        $region19: #{tpu_custom_call.1} parent=11 // pred_region
          _
        $region20: #{tpu_custom_call.1} parent=11 // pred_fallthru
          _
        // Predicated region
        $region21: #{tpu_custom_call.1} parent=11 // pred_check
          %p193 = pneg %p104
        $region22: #{tpu_custom_call.1} parent=11 // pred_check_branch
          %195 = sbr.rel (%p193) target = $region24
        $region23: #{tpu_custom_call.1} parent=11 // pred_region
          _
        $region24: #{tpu_custom_call.1} parent=11 // pred_fallthru
          _
        // Predicated region
        $region25: #{tpu_custom_call.1} parent=11 // pred_check
          %p196 = pneg %p125
        $region26: #{tpu_custom_call.1} parent=11 // pred_check_branch
          %198 = sbr.rel (%p196) target = $region28
        $region27: #{tpu_custom_call.1} parent=11 // pred_region
          _
        $region28: #{tpu_custom_call.1} parent=11 // pred_fallthru
          _
        // Predicated region
        $region29: #{tpu_custom_call.1} parent=11 // pred_check
          %p199 = pneg %p146
        $region30: #{tpu_custom_call.1} parent=11 // pred_check_branch
          %201 = sbr.rel (%p199) target = $region32
        $region31: #{tpu_custom_call.1} parent=11 // pred_region
          _
        $region32: #{tpu_custom_call.1} parent=11 // pred_fallthru
          _
      $region12: #{tpu_custom_call.1} parent=5 // pred_fallthru
        _
      %p202 = scmp.lt.s32.totalorder %s15, 2
      // Predicated region
      $region33: #{tpu_custom_call.1} parent=5 // pred_check
        %p203 = pneg %p202
      $region34: #{tpu_custom_call.1} parent=5 // pred_check_branch
        %205 = sbr.rel (%p203) target = $region36
      $region35: #{tpu_custom_call.1} parent=5 // pred_region
        // Predicated region
        $region37: #{tpu_custom_call.1} parent=35 // pred_check
          %p206 = pneg %p35
        $region38: #{tpu_custom_call.1} parent=35 // pred_check_branch
          %208 = sbr.rel (%p206) target = $region40
        $region39: #{tpu_custom_call.1} parent=35 // pred_region
          %p209 = scmp.lt.s32.totalorder %s15, 1
          %s210 = scalar_select %p209, %s15, 1
          %s211 = smul.addr %s210, 2
          %s212 = smul.addr %s211, 8
          %s213 = scalar_lea.vmem %s0, %s212
        $region40: #{tpu_custom_call.1} parent=35 // pred_fallthru
          _
      $region36: #{tpu_custom_call.1} parent=5 // pred_fallthru
        _
      %p214 = scmp.le.s32.totalorder 1, %s15
      %p215 = scmp.lt.s32.totalorder %s15, 3
      %p216 = pnand %p214, %p215
      %p217 = pneg %p216
      // Predicated region
      $region41: #{tpu_custom_call.1} parent=5 // pred_check
        _
      $region42: #{tpu_custom_call.1} parent=5 // pred_check_branch
        %219 = sbr.rel (%p216) target = $region44
      $region43: #{tpu_custom_call.1} parent=5 // pred_region
        %s220 = ssub.s32 %s15, 1
        %p221 = scmp.lt.s32.totalorder %s20, 1
        %s222 = scalar_select %p221, %s20, 1
        %s223 = smul.addr %s222, 2
        %s224 = smul.addr %s223, 8
        %s225 = scalar_lea.vmem %s0, %s224
        %p226 = pneg %p41
        %p227 = pneg %p38
        %p228 = pneg %p62
        %p229 = pneg %p59
        %p230 = pneg %p83
        %p231 = pneg %p80
        %p232 = pneg %p104
        %p233 = pneg %p101
        %p234 = pneg %p125
        %p235 = pneg %p122
        %p236 = pneg %p146
        %p237 = pneg %p143
        %p238 = pneg %p172
        %p239 = pneg %p169
        %s240 = sand.u32 %s159, 1
        %s241 = scalar_lea.sflag [#allocation3], %s240
        %s242 = sand.u32 %s159, 1
        %s243 = smul.addr %s242, 16
        %s244 = scalar_lea.vmem [#allocation2], %s243
        %p245 = scmp.lt.s32.totalorder %s20, 1
        %s246 = scalar_select %p245, %s20, 1
        %s247 = smul.addr %s246, 2
        %s248 = smul.addr %s247, 8
        %s249 = scalar_lea.vmem %s0, %s248
        %v250 = vld [vmem:[%s249] sm:$0xff]
        %v251 = vld [vmem:[%s249 + $0x8] sm:$0xff]
        %v252 = vadd.f32 %v250, %v251
        %253 = vadd.xlane.f32.xlu0 %v252
        %v254 = vpop.xlane.xlu0 %253
        %v255 = vrot.slane %v254, 4
        %v256 = vadd.f32 %v254, %v255
        %v257 = vrot.slane %v256, 2
        %v258 = vadd.f32 %v256, %v257
        %v259 = vrot.slane %v258, 1
        %v260 = vadd.f32 %v258, %v259
        %s261 = vtos %v260
        %v262 = vmul.f32 %v250, %v250
        %v263 = vmul.f32 %v251, %v251
        %v264 = vadd.f32 %v262, %v263
        %265 = vadd.xlane.f32.xlu0 %v264
        %v266 = vpop.xlane.xlu0 %265
        %v267 = vrot.slane %v266, 4
        %v268 = vadd.f32 %v266, %v267
        %v269 = vrot.slane %v268, 2
        %v270 = vadd.f32 %v268, %v269
        %v271 = vrot.slane %v270, 1
        %v272 = vadd.f32 %v270, %v271
        %s273 = vtos %v272
        %s274 = smul.f32 %s261, 0.00048828125
        %s275 = smul.f32 %s273, 0.00048828125
        %s276 = smul.f32 %s274, %s274
        %s277 = ssub.f32 %s275, %s276
        %s278 = sadd.f32 %s277, 1e-05
        %v279 = vstv %s278
        %v280 = vrsqrt.pop %v279
        %s281 = vtos %v280
        %v282 = vld [vmem:[%s1] sm:$0xff]
        %v283 = vld [vmem:[%s1 + $0x8] sm:$0xff]
        %v284 = vld [vmem:[%s1 + $0x10] sm:$0xff]
        %v285 = vld [vmem:[%s1 + $0x18] sm:$0xff]
        %v286 = vld [vmem:[%s1 + $0x20] sm:$0xff]
        %v287 = vld [vmem:[%s1 + $0x28] sm:$0xff]
        %v288 = vld [vmem:[%s1 + $0x30] sm:$0xff]
        %v289 = vld [vmem:[%s1 + $0x38] sm:$0xff]
        %v290 = vld [vmem:[%s1 + $0x40] sm:$0xff]
        %v291 = vld [vmem:[%s1 + $0x48] sm:$0xff]
        %v292 = vld [vmem:[%s1 + $0x50] sm:$0xff]
        %v293 = vld [vmem:[%s1 + $0x58] sm:$0xff]
        %v294 = vld [vmem:[%s1 + $0x60] sm:$0xff]
        %v295 = vld [vmem:[%s1 + $0x68] sm:$0xff]
        %v296 = vld [vmem:[%s1 + $0x70] sm:$0xff]
        %v297 = vld [vmem:[%s1 + $0x78] sm:$0xff]
        %v298 = vld [vmem:[%s1 + $0x80] sm:$0xff]
        %v299 = vld [vmem:[%s1 + $0x88] sm:$0xff]
        %v300 = vld [vmem:[%s1 + $0x90] sm:$0xff]
        %v301 = vld [vmem:[%s1 + $0x98] sm:$0xff]
        %v302 = vld [vmem:[%s1 + $0xa0] sm:$0xff]
        %v303 = vld [vmem:[%s1 + $0xa8] sm:$0xff]
        %v304 = vld [vmem:[%s1 + $0xb0] sm:$0xff]
        %v305 = vld [vmem:[%s1 + $0xb8] sm:$0xff]
        %v306 = vld [vmem:[%s1 + $0xc0] sm:$0xff]
        %v307 = vld [vmem:[%s1 + $0xc8] sm:$0xff]
        %v308 = vld [vmem:[%s1 + $0xd0] sm:$0xff]
        %v309 = vld [vmem:[%s1 + $0xd8] sm:$0xff]
        %v310 = vld [vmem:[%s1 + $0xe0] sm:$0xff]
        %v311 = vld [vmem:[%s1 + $0xe8] sm:$0xff]
        %v312 = vld [vmem:[%s1 + $0xf0] sm:$0xff]
        %v313 = vld [vmem:[%s1 + $0xf8] sm:$0xff]
        %314 = vmatprep.subr.mxu0 0.0
        %315 = vmatpush1.msra.mxu0 %v282
        %316 = vmatprep.subr.mxu0 0.0
        %317 = vmatpush1.msra.mxu0 %v283
        %318 = vmatprep.subr.mxu0 0.0
        %319 = vmatpush1.msra.mxu0 %v284
        %320 = vmatprep.subr.mxu0 0.0
        %321 = vmatpush1.msra.mxu0 %v285
        %322 = vmatprep.subr.mxu0 0.0
        %323 = vmatpush1.msra.mxu0 %v286
        %324 = vmatprep.subr.mxu0 0.0
        %325 = vmatpush1.msra.mxu0 %v287
        %326 = vmatprep.subr.mxu0 0.0
        %327 = vmatpush1.msra.mxu0 %v288
        %328 = vmatprep.subr.mxu0 0.0
        %329 = vmatpush1.msra.mxu0 %v289
        %330 = vmatprep.subr.mxu0 0.0
        %331 = vmatpush1.msra.mxu0 %v290
        %332 = vmatprep.subr.mxu0 0.0
        %333 = vmatpush1.msra.mxu0 %v291
        %334 = vmatprep.subr.mxu0 0.0
        %335 = vmatpush1.msra.mxu0 %v292
        %336 = vmatprep.subr.mxu0 0.0
        %337 = vmatpush1.msra.mxu0 %v293
        %338 = vmatprep.subr.mxu0 0.0
        %339 = vmatpush1.msra.mxu0 %v294
        %340 = vmatprep.subr.mxu0 0.0
        %341 = vmatpush1.msra.mxu0 %v295
        %342 = vmatprep.subr.mxu0 0.0
        %343 = vmatpush1.msra.mxu0 %v296
        %344 = vmatprep.subr.mxu0 0.0
        %345 = vmatpush1.msra.mxu0 %v297
        %346 = vmatprep.subr.mxu0 0.0
        %347 = vmatpush1.msra.mxu0 %v298
        %348 = vmatprep.subr.mxu0 0.0
        %349 = vmatpush1.msra.mxu0 %v299
        %350 = vmatprep.subr.mxu0 0.0
        %351 = vmatpush1.msra.mxu0 %v300
        %352 = vmatprep.subr.mxu0 0.0
        %353 = vmatpush1.msra.mxu0 %v301
        %354 = vmatprep.subr.mxu0 0.0
        %355 = vmatpush1.msra.mxu0 %v302
        %356 = vmatprep.subr.mxu0 0.0
        %357 = vmatpush1.msra.mxu0 %v303
        %358 = vmatprep.subr.mxu0 0.0
        %359 = vmatpush1.msra.mxu0 %v304
        %360 = vmatprep.subr.mxu0 0.0
        %361 = vmatpush1.msra.mxu0 %v305
        %362 = vmatprep.subr.mxu0 0.0
        %363 = vmatpush1.msra.mxu0 %v306
        %364 = vmatprep.subr.mxu0 0.0
        %365 = vmatpush1.msra.mxu0 %v307
        %366 = vmatprep.subr.mxu0 0.0
        %367 = vmatpush1.msra.mxu0 %v308
        %368 = vmatprep.subr.mxu0 0.0
        %369 = vmatpush1.msra.mxu0 %v309
        %370 = vmatprep.subr.mxu0 0.0
        %371 = vmatpush1.msra.mxu0 %v310
        %372 = vmatprep.subr.mxu0 0.0
        %373 = vmatpush1.msra.mxu0 %v311
        %374 = vmatprep.subr.mxu0 0.0
        %375 = vmatpush1.msra.mxu0 %v312
        %376 = vmatprep.subr.mxu0 0.0
        %377 = vmatpush1.msra.mxu0 %v313
        %378 = vmatprep.mubr.f32.mxu0 %v251
        %379 = vmatmul.mubr.f32.gmra.mrb[0].mxu0 %v250
        %v380 = vpop.f32.mrb[0].mxu0
        %v381 = vadd.f32 0.0, %v380
        %v382 = vpop.f32.mrb[0].mxu0
        %383 = vdwg.mxu0
        %v384 = vstv %s274
        %v385 = vsub.f32 %v381, %v384
        %v386 = vld [vmem:[%s4] sm:$0xff]
        %v387 = vstv %s281
        %v388 = vmul.f32 %v386, %v387
        %390 = vset.pattern.permute.xlu0 0
        %391 = vperm.xlu0 %390, %v388
        %v392 = vpop.permute.xlu0 %391
        %v394 = vmul.f32 %v385, %v392
        %v395 = vld [vmem:[%s5] sm:$0xff]
        %397 = vset.pattern.permute.xlu0 0
        %398 = vperm.xlu0 %397, %v395
        %v399 = vpop.permute.xlu0 %398
        %v401 = vadd.f32 %v394, %v399
        %v402 = vld [vmem:[%s2] sm:$0xff]
        %v403 = vld [vmem:[%s2 + $0x8] sm:$0xff]
        %v404 = vld [vmem:[%s2 + $0x10] sm:$0xff]
        %v405 = vld [vmem:[%s2 + $0x18] sm:$0xff]
        %v406 = vld [vmem:[%s2 + $0x20] sm:$0xff]
        %v407 = vld [vmem:[%s2 + $0x28] sm:$0xff]
        %v408 = vld [vmem:[%s2 + $0x30] sm:$0xff]
        %v409 = vld [vmem:[%s2 + $0x38] sm:$0xff]
        %vm410 = vcmask 523264
        %v412 = vsel %vm410, %v401, 0
        %414 = vmatprep.subr.mxu0 0.0
        %415 = vmatpush1.msra.mxu0 %v402
        %416 = vmatprep.subr.mxu0 0.0
        %417 = vmatpush1.msra.mxu0 %v403
        %418 = vmatprep.subr.mxu0 0.0
        %419 = vmatpush1.msra.mxu0 %v404
        %420 = vmatprep.subr.mxu0 0.0
        %421 = vmatpush1.msra.mxu0 %v405
        %422 = vmatprep.subr.mxu0 0.0
        %423 = vmatpush1.msra.mxu0 %v406
        %424 = vmatprep.subr.mxu0 0.0
        %425 = vmatpush1.msra.mxu0 %v407
        %426 = vmatprep.subr.mxu0 0.0
        %427 = vmatpush1.msra.mxu0 %v408
        %428 = vmatprep.subr.mxu0 0.0
        %429 = vmatpush1.msra.mxu0 %v409
        %430 = vmatprep.subr.mxu0 0.0
        %431 = vmatpush1.msra.mxu0 0.0
        %432 = vmatprep.subr.mxu0 0.0
        %433 = vmatpush1.msra.mxu0 0.0
        %434 = vmatprep.subr.mxu0 0.0
        %435 = vmatpush1.msra.mxu0 0.0
        %436 = vmatprep.subr.mxu0 0.0
        %437 = vmatpush1.msra.mxu0 0.0
        %438 = vmatprep.subr.mxu0 0.0
        %439 = vmatpush1.msra.mxu0 0.0
        %440 = vmatprep.subr.mxu0 0.0
        %441 = vmatpush1.msra.mxu0 0.0
        %442 = vmatprep.subr.mxu0 0.0
        %443 = vmatpush1.msra.mxu0 0.0
        %444 = vmatprep.subr.mxu0 0.0
        %445 = vmatpush1.msra.mxu0 0.0
        %446 = vmatprep.subr.mxu0 0.0
        %447 = vmatpush1.msra.mxu0 0.0
        %448 = vmatprep.subr.mxu0 0.0
        %449 = vmatpush1.msra.mxu0 0.0
        %450 = vmatprep.subr.mxu0 0.0
        %451 = vmatpush1.msra.mxu0 0.0
        %452 = vmatprep.subr.mxu0 0.0
        %453 = vmatpush1.msra.mxu0 0.0
        %454 = vmatprep.subr.mxu0 0.0
        %455 = vmatpush1.msra.mxu0 0.0
        %456 = vmatprep.subr.mxu0 0.0
        %457 = vmatpush1.msra.mxu0 0.0
        %458 = vmatprep.subr.mxu0 0.0
        %459 = vmatpush1.msra.mxu0 0.0
        %460 = vmatprep.subr.mxu0 0.0
        %461 = vmatpush1.msra.mxu0 0.0
        %462 = vmatprep.subr.mxu0 0.0
        %463 = vmatpush1.msra.mxu0 0.0
        %464 = vmatprep.subr.mxu0 0.0
        %465 = vmatpush1.msra.mxu0 0.0
        %466 = vmatprep.subr.mxu0 0.0
        %467 = vmatpush1.msra.mxu0 0.0
        %468 = vmatprep.subr.mxu0 0.0
        %469 = vmatpush1.msra.mxu0 0.0
        %470 = vmatprep.subr.mxu0 0.0
        %471 = vmatpush1.msra.mxu0 0.0
        %472 = vmatprep.subr.mxu0 0.0
        %473 = vmatpush1.msra.mxu0 0.0
        %474 = vmatprep.subr.mxu0 0.0
        %475 = vmatpush1.msra.mxu0 0.0
        %476 = vmatprep.subr.mxu0 0.0
        %477 = vmatpush1.msra.mxu0 0.0
        %478 = vmatprep.mubr.f32.mxu0 0.0
        %479 = vmatmul.mubr.f32.gmra.mrb[0].mxu0 %v412
        %v480 = vpop.f32.mrb[0].mxu0
        %v481 = vadd.f32 0.0, %v480
        %v482 = vpop.f32.mrb[0].mxu0
        %483 = vdwg.mxu0
        %v484 = vld [vmem:[%s3] sm:$0xff]
        %v485 = vld [vmem:[%s3 + $0x8] sm:$0xff]
        %v486 = vld [vmem:[%s3 + $0x10] sm:$0xff]
        %v487 = vld [vmem:[%s3 + $0x18] sm:$0xff]
        %v488 = vld [vmem:[%s3 + $0x20] sm:$0xff]
        %v489 = vld [vmem:[%s3 + $0x28] sm:$0xff]
        %v490 = vld [vmem:[%s3 + $0x30] sm:$0xff]
        %v491 = vld [vmem:[%s3 + $0x38] sm:$0xff]
        %492 = vmatprep.subr.mxu0 0.0
        %493 = vmatpush1.msra.mxu0 %v484
        %494 = vmatprep.subr.mxu0 0.0
        %495 = vmatpush1.msra.mxu0 %v485
        %496 = vmatprep.subr.mxu0 0.0
        %497 = vmatpush1.msra.mxu0 %v486
        %498 = vmatprep.subr.mxu0 0.0
        %499 = vmatpush1.msra.mxu0 %v487
        %500 = vmatprep.subr.mxu0 0.0
        %501 = vmatpush1.msra.mxu0 %v488
        %502 = vmatprep.subr.mxu0 0.0
        %503 = vmatpush1.msra.mxu0 %v489
        %504 = vmatprep.subr.mxu0 0.0
        %505 = vmatpush1.msra.mxu0 %v490
        %506 = vmatprep.subr.mxu0 0.0
        %507 = vmatpush1.msra.mxu0 %v491
        %508 = vmatprep.subr.mxu0 0.0
        %509 = vmatpush1.msra.mxu0 0.0
        %510 = vmatprep.subr.mxu0 0.0
        %511 = vmatpush1.msra.mxu0 0.0
        %512 = vmatprep.subr.mxu0 0.0
        %513 = vmatpush1.msra.mxu0 0.0
        %514 = vmatprep.subr.mxu0 0.0
        %515 = vmatpush1.msra.mxu0 0.0
        %516 = vmatprep.subr.mxu0 0.0
        %517 = vmatpush1.msra.mxu0 0.0
        %518 = vmatprep.subr.mxu0 0.0
        %519 = vmatpush1.msra.mxu0 0.0
        %520 = vmatprep.subr.mxu0 0.0
        %521 = vmatpush1.msra.mxu0 0.0
        %522 = vmatprep.subr.mxu0 0.0
        %523 = vmatpush1.msra.mxu0 0.0
        %524 = vmatprep.subr.mxu0 0.0
        %525 = vmatpush1.msra.mxu0 0.0
        %526 = vmatprep.subr.mxu0 0.0
        %527 = vmatpush1.msra.mxu0 0.0
        %528 = vmatprep.subr.mxu0 0.0
        %529 = vmatpush1.msra.mxu0 0.0
        %530 = vmatprep.subr.mxu0 0.0
        %531 = vmatpush1.msra.mxu0 0.0
        %532 = vmatprep.subr.mxu0 0.0
        %533 = vmatpush1.msra.mxu0 0.0
        %534 = vmatprep.subr.mxu0 0.0
        %535 = vmatpush1.msra.mxu0 0.0
        %536 = vmatprep.subr.mxu0 0.0
        %537 = vmatpush1.msra.mxu0 0.0
        %538 = vmatprep.subr.mxu0 0.0
        %539 = vmatpush1.msra.mxu0 0.0
        %540 = vmatprep.subr.mxu0 0.0
        %541 = vmatpush1.msra.mxu0 0.0
        %542 = vmatprep.subr.mxu0 0.0
        %543 = vmatpush1.msra.mxu0 0.0
        %544 = vmatprep.subr.mxu0 0.0
        %545 = vmatpush1.msra.mxu0 0.0
        %546 = vmatprep.subr.mxu0 0.0
        %547 = vmatpush1.msra.mxu0 0.0
        %548 = vmatprep.subr.mxu0 0.0
        %549 = vmatpush1.msra.mxu0 0.0
        %550 = vmatprep.subr.mxu0 0.0
        %551 = vmatpush1.msra.mxu0 0.0
        %552 = vmatprep.subr.mxu0 0.0
        %553 = vmatpush1.msra.mxu0 0.0
        %554 = vmatprep.subr.mxu0 0.0
        %555 = vmatpush1.msra.mxu0 0.0
        %556 = vmatprep.mubr.f32.mxu0 0.0
        %557 = vmatmul.mubr.f32.gmra.mrb[0].mxu0 %v412
        %v558 = vpop.f32.mrb[0].mxu0
        %v559 = vadd.f32 0.0, %v558
        %v560 = vpop.f32.mrb[0].mxu0
        %561 = vdwg.mxu0
        %v563 = vsel %vm410, %v481, 0
        %v566 = vsel %vm410, %v559, 0
        %568 = vmatprep.subr.mxu0 0.0
        %569 = vmatpush1.xpose.msra.mxu0 %v566
        %570 = vmatprep.subr.mxu0 0.0
        %571 = vmatpush1.xpose.msra.mxu0 0.0
        %572 = vmatprep.subr.mxu0 0.0
        %573 = vmatpush1.xpose.msra.mxu0 0.0
        %574 = vmatprep.subr.mxu0 0.0
        %575 = vmatpush1.xpose.msra.mxu0 0.0
        %576 = vmatprep.subr.mxu0 0.0
        %577 = vmatpush1.xpose.msra.mxu0 0.0
        %578 = vmatprep.subr.mxu0 0.0
        %579 = vmatpush1.xpose.msra.mxu0 0.0
        %580 = vmatprep.subr.mxu0 0.0
        %581 = vmatpush1.xpose.msra.mxu0 0.0
        %582 = vmatprep.subr.mxu0 0.0
        %583 = vmatpush1.xpose.msra.mxu0 0.0
        %584 = vmatprep.subr.mxu0 0.0
        %585 = vmatpush1.xpose.msra.mxu0 0.0
        %586 = vmatprep.subr.mxu0 0.0
        %587 = vmatpush1.xpose.msra.mxu0 0.0
        %588 = vmatprep.subr.mxu0 0.0
        %589 = vmatpush1.xpose.msra.mxu0 0.0
        %590 = vmatprep.subr.mxu0 0.0
        %591 = vmatpush1.xpose.msra.mxu0 0.0
        %592 = vmatprep.subr.mxu0 0.0
        %593 = vmatpush1.xpose.msra.mxu0 0.0
        %594 = vmatprep.subr.mxu0 0.0
        %595 = vmatpush1.xpose.msra.mxu0 0.0
        %596 = vmatprep.subr.mxu0 0.0
        %597 = vmatpush1.xpose.msra.mxu0 0.0
        %598 = vmatprep.subr.mxu0 0.0
        %599 = vmatpush1.xpose.msra.mxu0 0.0
        %600 = vmatprep.subr.mxu0 0.0
        %601 = vmatpush1.xpose.msra.mxu0 0.0
        %602 = vmatprep.subr.mxu0 0.0
        %603 = vmatpush1.xpose.msra.mxu0 0.0
        %604 = vmatprep.subr.mxu0 0.0
        %605 = vmatpush1.xpose.msra.mxu0 0.0
        %606 = vmatprep.subr.mxu0 0.0
        %607 = vmatpush1.xpose.msra.mxu0 0.0
        %608 = vmatprep.subr.mxu0 0.0
        %609 = vmatpush1.xpose.msra.mxu0 0.0
        %610 = vmatprep.subr.mxu0 0.0
        %611 = vmatpush1.xpose.msra.mxu0 0.0
        %612 = vmatprep.subr.mxu0 0.0
        %613 = vmatpush1.xpose.msra.mxu0 0.0
        %614 = vmatprep.subr.mxu0 0.0
        %615 = vmatpush1.xpose.msra.mxu0 0.0
        %616 = vmatprep.subr.mxu0 0.0
        %617 = vmatpush1.xpose.msra.mxu0 0.0
        %618 = vmatprep.subr.mxu0 0.0
        %619 = vmatpush1.xpose.msra.mxu0 0.0
        %620 = vmatprep.subr.mxu0 0.0
        %621 = vmatpush1.xpose.msra.mxu0 0.0
        %622 = vmatprep.subr.mxu0 0.0
        %623 = vmatpush1.xpose.msra.mxu0 0.0
        %624 = vmatprep.subr.mxu0 0.0
        %625 = vmatpush1.xpose.msra.mxu0 0.0
        %626 = vmatprep.subr.mxu0 0.0
        %627 = vmatpush1.xpose.msra.mxu0 0.0
        %628 = vmatprep.subr.mxu0 0.0
        %629 = vmatpush1.xpose.msra.mxu0 0.0
        %630 = vmatprep.subr.mxu0 0.0
        %631 = vmatpush1.xpose.msra.mxu0 0.0
        %632 = vmatprep.mubr.f32.mxu0 0.0
        %633 = vmatmul.mubr.f32.gmra.mrb[0].mxu0 %v563
        %v634 = vpop.f32.mrb[0].mxu0
        %v635 = vadd.f32 0.0, %v634
        %v636 = vpop.f32.mrb[0].mxu0
        %637 = vdwg.mxu0
        %v638 = vmul.f32 %v635, 0.125
        %vm639 = vcmask 64512
        %v640 = vsel %vm639, %v638, -inf
        %641 = vmax.xlane.f32.xlu0 %v640
        %v642 = vpop.xlane.xlu0 %641
        %v643 = vsub.f32 %v638, %v642
        %v644 = vmul.f32 %v643, 1.442695
        %v645 = vpow.pop %v644
        %v646 = vsel %vm639, %v645, 0.0
        %647 = vadd.xlane.f32.xlu0 %v646
        %v648 = vpop.xlane.xlu0 %647
        %v649 = vrcp.pop %v648
        %v650 = vmul.f32 %v645, %v649
        %v652 = vsel %vm639, %v650, 0
        %654 = vmatprep.subr.mxu0 %v251
        %655 = vmatpush1.msra.mxu0 %v250
        %656 = vmatprep.subr.mxu0 0.0
        %657 = vmatpush1.msra.mxu0 0.0
        %658 = vmatprep.subr.mxu0 0.0
        %659 = vmatpush1.msra.mxu0 0.0
        %660 = vmatprep.subr.mxu0 0.0
        %661 = vmatpush1.msra.mxu0 0.0
        %662 = vmatprep.subr.mxu0 0.0
        %663 = vmatpush1.msra.mxu0 0.0
        %664 = vmatprep.subr.mxu0 0.0
        %665 = vmatpush1.msra.mxu0 0.0
        %666 = vmatprep.subr.mxu0 0.0
        %667 = vmatpush1.msra.mxu0 0.0
        %668 = vmatprep.subr.mxu0 0.0
        %669 = vmatpush1.msra.mxu0 0.0
        %670 = vmatprep.subr.mxu0 0.0
        %671 = vmatpush1.msra.mxu0 0.0
        %672 = vmatprep.subr.mxu0 0.0
        %673 = vmatpush1.msra.mxu0 0.0
        %674 = vmatprep.subr.mxu0 0.0
        %675 = vmatpush1.msra.mxu0 0.0
        %676 = vmatprep.subr.mxu0 0.0
        %677 = vmatpush1.msra.mxu0 0.0
        %678 = vmatprep.subr.mxu0 0.0
        %679 = vmatpush1.msra.mxu0 0.0
        %680 = vmatprep.subr.mxu0 0.0
        %681 = vmatpush1.msra.mxu0 0.0
        %682 = vmatprep.subr.mxu0 0.0
        %683 = vmatpush1.msra.mxu0 0.0
        %684 = vmatprep.subr.mxu0 0.0
        %685 = vmatpush1.msra.mxu0 0.0
        %686 = vmatprep.subr.mxu0 0.0
        %687 = vmatpush1.msra.mxu0 0.0
        %688 = vmatprep.subr.mxu0 0.0
        %689 = vmatpush1.msra.mxu0 0.0
        %690 = vmatprep.subr.mxu0 0.0
        %691 = vmatpush1.msra.mxu0 0.0
        %692 = vmatprep.subr.mxu0 0.0
        %693 = vmatpush1.msra.mxu0 0.0
        %694 = vmatprep.subr.mxu0 0.0
        %695 = vmatpush1.msra.mxu0 0.0
        %696 = vmatprep.subr.mxu0 0.0
        %697 = vmatpush1.msra.mxu0 0.0
        %698 = vmatprep.subr.mxu0 0.0
        %699 = vmatpush1.msra.mxu0 0.0
        %700 = vmatprep.subr.mxu0 0.0
        %701 = vmatpush1.msra.mxu0 0.0
        %702 = vmatprep.subr.mxu0 0.0
        %703 = vmatpush1.msra.mxu0 0.0
        %704 = vmatprep.subr.mxu0 0.0
        %705 = vmatpush1.msra.mxu0 0.0
        %706 = vmatprep.subr.mxu0 0.0
        %707 = vmatpush1.msra.mxu0 0.0
        %708 = vmatprep.subr.mxu0 0.0
        %709 = vmatpush1.msra.mxu0 0.0
        %710 = vmatprep.subr.mxu0 0.0
        %711 = vmatpush1.msra.mxu0 0.0
        %712 = vmatprep.subr.mxu0 0.0
        %713 = vmatpush1.msra.mxu0 0.0
        %714 = vmatprep.subr.mxu0 0.0
        %715 = vmatpush1.msra.mxu0 0.0
        %716 = vmatprep.subr.mxu0 0.0
        %717 = vmatpush1.msra.mxu0 0.0
        %718 = vmatprep.mubr.f32.mxu0 0.0
        %719 = vmatmul.mubr.f32.gmra.mrb[0].mxu0 %v652
        %v720 = vpop.f32.mrb[0].mxu0
        %v721 = vadd.f32 0.0, %v720
        %v722 = vpop.f32.mrb[0].mxu0
        %v723 = vadd.f32 0.0, %v722
        %724 = vdwg.mxu0
        %725 = vst [vmem:[%s244] sm:$0xff] %v721
        %726 = vst [vmem:[%s244 + $0x8] sm:$0xff] %v723
        %s727 = sand.u32 %s159, 1
        %s728 = scalar_lea.sflag [#allocation3], %s727
        %s729 = sand.u32 %s159, 1
        %s730 = smul.addr %s729, 16
        %s731 = scalar_lea.vmem [#allocation2], %s730
        // Predicated region
        $region45: #{tpu_custom_call.1} parent=43 // pred_check
          %p732 = pneg %p169
        $region46: #{tpu_custom_call.1} parent=43 // pred_check_branch
          %734 = sbr.rel (%p732) target = $region48
        $region47: #{tpu_custom_call.1} parent=43 // pred_region
          %s736 = ssub.s32 256, 256
          %737 = vsyncadd %s728, %s736
          %s738 = smul.addr %s20, 2
          %s739 = smul.addr %s738, 128
          %s740 = scalar_lea.hbm %s6, %s739
          %s742 = sshll.u32 %s731, 4
          %s743 = int_to_ptr.vmem [resolvable:$true] %s742
          %745 = dma.vmem_to_hbm [thread:$0]  %s743, 256, %s740, %s728
        $region48: #{tpu_custom_call.1} parent=43 // pred_fallthru
          _
      $region44: #{tpu_custom_call.1} parent=5 // pred_fallthru
        _
      %p746 = scmp.le.s32.totalorder 2, %s15
      // Predicated region
      $region49: #{tpu_custom_call.1} parent=5 // pred_check
        %p747 = pneg %p746
      $region50: #{tpu_custom_call.1} parent=5 // pred_check_branch
        %749 = sbr.rel (%p747) target = $region52
      $region51: #{tpu_custom_call.1} parent=5 // pred_region
        %s750 = ssub.s32 %s15, 2
        // Predicated region
        $region53: #{tpu_custom_call.1} parent=51 // pred_check
          %p751 = pneg %p175
        $region54: #{tpu_custom_call.1} parent=51 // pred_check_branch
          %753 = sbr.rel (%p751) target = $region56
        $region55: #{tpu_custom_call.1} parent=51 // pred_region
          %s754 = sand.u32 %s160, 1
          %s755 = scalar_lea.sflag [#allocation3], %s754
          %s756 = sand.u32 %s160, 1
          %s757 = smul.addr %s756, 16
          %s758 = scalar_lea.vmem [#allocation2], %s757
          %759 = dma.done %s755, 256
        $region56: #{tpu_custom_call.1} parent=51 // pred_fallthru
          _
      $region52: #{tpu_custom_call.1} parent=5 // pred_fallthru
        _
    $region6: #{tpu_custom_call.1} parent=1 // loop_footer
      %s19 = sadd.s32 1, %s15
    $region7: #{tpu_custom_call.1} parent=1 // loop_footer_branch
      %14 = sbr.rel target = $region3
    $region8: #{tpu_custom_call.1} parent=1 // loop_exit
      _
    %760 = vsyncpa [#allocation3], 1
    %s761 = scalar_lea.sflag [#allocation3], 1
    %762 = vsyncpa %s761, 1

</llo_original>
